<compile_context>
chip_gen: v6e
topology: v6e:2x2x1
jax: 0.10.0
libtpu: 0.0.40
codegen_flags: <defaults>
</compile_context>

<pallas_src>
import functools

import jax
import jax.numpy as jnp
from jax.experimental import pallas as pl
from jax.experimental.pallas import tpu as pltpu

INPUT_DIM = 387
H1 = 128
H2 = 64
NUM_DOMAINS = 5

MAX_TB = 1024      # batch tile cap: x tile (1024 x 387 f32 ~ 1.5 MiB, ~2 MiB lane-padded),
                   # double-buffered ~4 MiB -> fits comfortably under v5e's 16 MiB default
                   # scoped-VMEM limit; amortizes the ~0.35 us per-grid-step overhead.


def _round_up(n, m):
    return ((n + m - 1) // m) * m


def _mlp_kernel(x_ref, w1_ref, b1_ref, w2_ref, b2_ref, w3_ref, b3_ref, o_ref):
    """Fused 3-layer MLP forward for one batch tile (all weights resident in VMEM).

    All matmuls are f32 with f32 accumulation; bias-add / ReLU run in f32 on the VPU.
    NOTE: edge (remainder) grid blocks compute on whatever stale VMEM sits past row B;
    those rows' output writes are dropped by Pallas, so results are correct — do not
    add NaN/Inf checks inside the kernel.
    """
    x = x_ref[...].astype(jnp.float32)   # accepts f32 or bf16 input
    h1 = jnp.dot(x, w1_ref[...], preferred_element_type=jnp.float32) + b1_ref[...]
    h1 = jnp.maximum(h1, 0.0)                                                 # ReLU
    h2 = jnp.dot(h1, w2_ref[...], preferred_element_type=jnp.float32) + b2_ref[...]
    h2 = jnp.maximum(h2, 0.0)                                                 # ReLU
    out = jnp.dot(h2, w3_ref[...], preferred_element_type=jnp.float32) + b3_ref[...]
    o_ref[...] = out.astype(o_ref.dtype)


@functools.partial(jax.jit, static_argnames=("max_tb",))
def domain_classifier_forward(x, params, max_tb=MAX_TB):
    """x: (B, INPUT_DIM) float32 (or bfloat16). params = (w1,b1,w2,b2,w3,b3), weights
    stored (in_features, out_features), biases (1, out). Returns logits (B, NUM_DOMAINS) f32."""
    w1, b1, w2, b2, w3, b3 = params
    B = x.shape[0]

    # Tile choice: as large as possible (DMA-efficiency / step-overhead amortization) but
    # capped at ceil(B/2) rounded to 8 so the grid keeps >= 2 steps — on v7x the "parallel"
    # axis shards those steps across both TensorCores. No padding of x is materialized;
    # Pallas clamps edge-block DMAs (grid = cdiv) and drops OOB output writes.
    tb = min(max_tb, _round_up(pl.cdiv(B, 2), 8))
    grid = (pl.cdiv(B, tb),)

    flops = 2 * B * (INPUT_DIM * H1 + H1 * H2 + H2 * NUM_DOMAINS)
    bytes_accessed = (
        B * INPUT_DIM * x.dtype.itemsize                      # x read
        + B * NUM_DOMAINS * 4                                 # logits write (narrow, no pad)
        + (INPUT_DIM * H1 + H1 * H2 + H2 * NUM_DOMAINS) * 4   # weights (f32, fetched once)
        + (H1 + H2 + NUM_DOMAINS) * 4                         # biases (f32)
    )

    return pl.pallas_call(
        _mlp_kernel,
        out_shape=jax.ShapeDtypeStruct((B, NUM_DOMAINS), jnp.float32),
        grid_spec=pltpu.PrefetchScalarGridSpec(
            num_scalar_prefetch=0,
            grid=grid,
            in_specs=[
                pl.BlockSpec((tb, INPUT_DIM), lambda i: (i, 0)),       # x tile (full 387-wide row)
                pl.BlockSpec((INPUT_DIM, H1), lambda i: (0, 0)),       # W1 (resident; DMA'd once)
                pl.BlockSpec((1, H1), lambda i: (0, 0)),               # b1
                pl.BlockSpec((H1, H2), lambda i: (0, 0)),              # W2
                pl.BlockSpec((1, H2), lambda i: (0, 0)),               # b2
                pl.BlockSpec((H2, NUM_DOMAINS), lambda i: (0, 0)),     # W3
                pl.BlockSpec((1, NUM_DOMAINS), lambda i: (0, 0)),      # b3
            ],
            out_specs=pl.BlockSpec((tb, NUM_DOMAINS), lambda i: (i, 0)),
        ),
        compiler_params=pltpu.CompilerParams(
            dimension_semantics=("parallel",),
        ),
        cost_estimate=pl.CostEstimate(
            flops=flops, transcendentals=0, bytes_accessed=bytes_accessed),
    )(x, w1, b1, w2, b2, w3, b3)


def init_params(key):
    """Deterministic init matching the layer shapes of the PyTorch module.
    Weights stored (in_features, out_features) (transposed vs. nn.Linear), biases (1, out)."""
    k1, k2, k3 = jax.random.split(key, 3)

    def linear_init(k, fan_in, fan_out):
        bound = 1.0 / jnp.sqrt(fan_in)           # torch.nn.Linear default-ish
        kw, kb = jax.random.split(k)
        w = jax.random.uniform(kw, (fan_in, fan_out), jnp.float32, -bound, bound)
        b = jax.random.uniform(kb, (1, fan_out), jnp.float32, -bound, bound)
        return w, b

    w1, b1 = linear_init(k1, INPUT_DIM, H1)
    w2, b2 = linear_init(k2, H1, H2)
    w3, b3 = linear_init(k3, H2, NUM_DOMAINS)
    return (w1, b1, w2, b2, w3, b3)


def _reference_forward(x, params):
    """Pure-JAX reference of the PyTorch forward."""
    w1, b1, w2, b2, w3, b3 = params
    h1 = jnp.maximum(x @ w1 + b1, 0.0)
    h2 = jnp.maximum(h1 @ w2 + b2, 0.0)
    return h2 @ w3 + b3


if __name__ == "__main__":
    key = jax.random.PRNGKey(0)
    kp, kx1, kx2 = jax.random.split(key, 3)
    params = init_params(kp)

    # Small batch (single grid step).
    x1 = jax.random.normal(kx1, (8, INPUT_DIM), jnp.float32)
    out1 = jax.block_until_ready(domain_classifier_forward(x1, params))
    ref1 = _reference_forward(x1, params)
    assert out1.shape == (8, NUM_DOMAINS)
    # f32 path; tolerance covers default-precision MXU lowering of f32 matmuls.
    assert jnp.allclose(out1, ref1, atol=2e-2, rtol=2e-2), "mismatch vs. reference (B=8)"

    # Larger, non-tile-multiple batch (2-step grid with a remainder block).
    x2 = jax.random.normal(kx2, (300, INPUT_DIM), jnp.float32)
    out2 = jax.block_until_ready(domain_classifier_forward(x2, params))
    ref2 = _reference_forward(x2, params)
    assert out2.shape == (300, NUM_DOMAINS)
    assert jnp.allclose(out2, ref2, atol=2e-2, rtol=2e-2), "mismatch vs. reference (B=300)"

    print("KERNEL_OK")
</pallas_src>

<mosaic_0001>
module attributes {stable_mosaic.version = 11 : i64} {
  func.func @_mlp_kernel(%arg0: i32, %arg1: memref<8x387xf32, #tpu.memory_space<vmem>>, %arg2: memref<387x128xf32, #tpu.memory_space<vmem>>, %arg3: memref<1x128xf32, #tpu.memory_space<vmem>>, %arg4: memref<128x64xf32, #tpu.memory_space<vmem>>, %arg5: memref<1x64xf32, #tpu.memory_space<vmem>>, %arg6: memref<64x5xf32, #tpu.memory_space<vmem>>, %arg7: memref<1x5xf32, #tpu.memory_space<vmem>>, %arg8: memref<8x5xf32, #tpu.memory_space<vmem>>) attributes {dimension_semantics = [#tpu.dimension_semantics<parallel>], iteration_bounds = array<i64: 1>, scalar_prefetch = 0 : i64, scratch_operands = 0 : i64, tpu.core_type = #tpu.core_type<tc>, window_params = [{transform_indices = @transform_0, window_bounds = array<i64: 8, 387>}, {pipeline_mode = #tpu.pipeline_mode<synchronous>, transform_indices = @transform_1, window_bounds = array<i64: 387, 128>}, {pipeline_mode = #tpu.pipeline_mode<synchronous>, transform_indices = @transform_2, window_bounds = array<i64: 1, 128>}, {pipeline_mode = #tpu.pipeline_mode<synchronous>, transform_indices = @transform_3, window_bounds = array<i64: 128, 64>}, {pipeline_mode = #tpu.pipeline_mode<synchronous>, transform_indices = @transform_4, window_bounds = array<i64: 1, 64>}, {pipeline_mode = #tpu.pipeline_mode<synchronous>, transform_indices = @transform_5, window_bounds = array<i64: 64, 5>}, {pipeline_mode = #tpu.pipeline_mode<synchronous>, transform_indices = @transform_6, window_bounds = array<i64: 1, 5>}, {transform_indices = @transform_7, window_bounds = array<i64: 8, 5>}]} {
    %c0 = arith.constant 0 : index
    %c0_0 = arith.constant 0 : index
    %0 = vector.load %arg1[%c0, %c0_0] : memref<8x387xf32, #tpu.memory_space<vmem>>, vector<8x387xf32>
    %c0_1 = arith.constant 0 : index
    %c0_2 = arith.constant 0 : index
    %1 = vector.load %arg2[%c0_1, %c0_2] : memref<387x128xf32, #tpu.memory_space<vmem>>, vector<387x128xf32>
    %cst = arith.constant dense<0.000000e+00> : vector<8x128xf32>
    %2 = tpu.matmul %0, %1, %cst {dimension_numbers = #tpu.dot_dimension_numbers<[1], [0], [0], [1], [0, 0, 1, 1], [], []>} : vector<8x387xf32>, vector<387x128xf32>, vector<8x128xf32> -> vector<8x128xf32>
    %c0_3 = arith.constant 0 : index
    %c0_4 = arith.constant 0 : index
    %3 = vector.load %arg3[%c0_3, %c0_4] : memref<1x128xf32, #tpu.memory_space<vmem>>, vector<1x128xf32>
    %4 = vector.broadcast %3 : vector<1x128xf32> to vector<8x128xf32>
    %5 = arith.addf %2, %4 : vector<8x128xf32>
    %cst_5 = arith.constant 0.000000e+00 : f32
    %6 = vector.broadcast %cst_5 : f32 to vector<8x128xf32>
    %7 = arith.maximumf %5, %6 : vector<8x128xf32>
    %c0_6 = arith.constant 0 : index
    %c0_7 = arith.constant 0 : index
    %8 = vector.load %arg4[%c0_6, %c0_7] : memref<128x64xf32, #tpu.memory_space<vmem>>, vector<128x64xf32>
    %cst_8 = arith.constant dense<0.000000e+00> : vector<8x64xf32>
    %9 = tpu.matmul %7, %8, %cst_8 {dimension_numbers = #tpu.dot_dimension_numbers<[1], [0], [0], [1], [0, 0, 1, 1], [], []>} : vector<8x128xf32>, vector<128x64xf32>, vector<8x64xf32> -> vector<8x64xf32>
    %c0_9 = arith.constant 0 : index
    %c0_10 = arith.constant 0 : index
    %10 = vector.load %arg5[%c0_9, %c0_10] : memref<1x64xf32, #tpu.memory_space<vmem>>, vector<1x64xf32>
    %11 = vector.broadcast %10 : vector<1x64xf32> to vector<8x64xf32>
    %12 = arith.addf %9, %11 : vector<8x64xf32>
    %cst_11 = arith.constant 0.000000e+00 : f32
    %13 = vector.broadcast %cst_11 : f32 to vector<8x64xf32>
    %14 = arith.maximumf %12, %13 : vector<8x64xf32>
    %c0_12 = arith.constant 0 : index
    %c0_13 = arith.constant 0 : index
    %15 = vector.load %arg6[%c0_12, %c0_13] : memref<64x5xf32, #tpu.memory_space<vmem>>, vector<64x5xf32>
    %cst_14 = arith.constant dense<0.000000e+00> : vector<8x5xf32>
    %16 = tpu.matmul %14, %15, %cst_14 {dimension_numbers = #tpu.dot_dimension_numbers<[1], [0], [0], [1], [0, 0, 1, 1], [], []>} : vector<8x64xf32>, vector<64x5xf32>, vector<8x5xf32> -> vector<8x5xf32>
    %c0_15 = arith.constant 0 : index
    %c0_16 = arith.constant 0 : index
    %17 = vector.load %arg7[%c0_15, %c0_16] : memref<1x5xf32, #tpu.memory_space<vmem>>, vector<1x5xf32>
    %18 = vector.broadcast %17 : vector<1x5xf32> to vector<8x5xf32>
    %19 = arith.addf %16, %18 : vector<8x5xf32>
    %c0_17 = arith.constant 0 : index
    %c0_18 = arith.constant 0 : index
    %20 = vector.load %arg8[%c0_17, %c0_18] : memref<8x5xf32, #tpu.memory_space<vmem>>, vector<8x5xf32>
    tpu.vector_store %arg8[%c0_17, %c0_18], %19 {strides = array<i32>} : memref<8x5xf32, #tpu.memory_space<vmem>>, vector<8x5xf32>,
    return
  }
  func.func @transform_0(%arg0: i32) -> (i32, i32) {
    %c0_i32 = arith.constant 0 : i32
    %c0_i32_0 = arith.constant 0 : i32
    return %arg0, %c0_i32 : i32, i32
  }
  func.func @transform_1(%arg0: i32) -> (i32, i32) {
    %c0_i32 = arith.constant 0 : i32
    %c0_i32_0 = arith.constant 0 : i32
    %c0_i32_1 = arith.constant 0 : i32
    return %c0_i32, %c0_i32_0 : i32, i32
  }
  func.func @transform_2(%arg0: i32) -> (i32, i32) {
    %c0_i32 = arith.constant 0 : i32
    %c0_i32_0 = arith.constant 0 : i32
    %c0_i32_1 = arith.constant 0 : i32
    return %c0_i32, %c0_i32_0 : i32, i32
  }
  func.func @transform_3(%arg0: i32) -> (i32, i32) {
    %c0_i32 = arith.constant 0 : i32
    %c0_i32_0 = arith.constant 0 : i32
    %c0_i32_1 = arith.constant 0 : i32
    return %c0_i32, %c0_i32_0 : i32, i32
  }
  func.func @transform_4(%arg0: i32) -> (i32, i32) {
    %c0_i32 = arith.constant 0 : i32
    %c0_i32_0 = arith.constant 0 : i32
    %c0_i32_1 = arith.constant 0 : i32
    return %c0_i32, %c0_i32_0 : i32, i32
  }
  func.func @transform_5(%arg0: i32) -> (i32, i32) {
    %c0_i32 = arith.constant 0 : i32
    %c0_i32_0 = arith.constant 0 : i32
    %c0_i32_1 = arith.constant 0 : i32
    return %c0_i32, %c0_i32_0 : i32, i32
  }
  func.func @transform_6(%arg0: i32) -> (i32, i32) {
    %c0_i32 = arith.constant 0 : i32
    %c0_i32_0 = arith.constant 0 : i32
    %c0_i32_1 = arith.constant 0 : i32
    return %c0_i32, %c0_i32_0 : i32, i32
  }
  func.func @transform_7(%arg0: i32) -> (i32, i32) {
    %c0_i32 = arith.constant 0 : i32
    %c0_i32_0 = arith.constant 0 : i32
    return %arg0, %c0_i32 : i32, i32
  }
}

</mosaic_0001>

<llo_original>
// kernel: domain_classifier_forward.1
$region0: #{domain_classifier_forward.1}
  #allocation0 [shape = 'u32[]', space=smem, size = 0x4, offset = 0x4, fixed_abs, tag = 'smem constant byte address 0x4 - core index']
  #allocation1 [shape = 'u32[144,128]{1,0:T(1,128)}', space=vmem, size = 0x12000, scoped, tag = 'internal scratch']
  %s0 = inlined_call_operand.vmem [shape: f32[8,387], index: 0, kind: input, shape index: {}]
  %s1 = inlined_call_operand.hbm [shape: f32[387,128], index: 1, kind: input, shape index: {}]
  %s2 = inlined_call_operand.vmem [shape: f32[1,128], index: 2, kind: input, shape index: {}]
  %s3 = inlined_call_operand.vmem [shape: f32[128,64], index: 3, kind: input, shape index: {}]
  %s4 = inlined_call_operand.vmem [shape: f32[1,64], index: 4, kind: input, shape index: {}]
  %s5 = inlined_call_operand.vmem [shape: f32[64,5], index: 5, kind: input, shape index: {}]
  %s6 = inlined_call_operand.vmem [shape: f32[1,5], index: 6, kind: input, shape index: {}]
  %s7 = inlined_call_operand.hbm [shape: f32[8,5], index: 7, kind: output, shape index: {}]
  %s8 = sld [smem:[#allocation0]]
  $region42: #{domain_classifier_forward.1} parent=0
    _
  %s10 = ssub.s32 1, %s8
  %s11 = scalar_select 0, %s10, %s8
  $region1: #{domain_classifier_forward.1} parent=0
    #allocation2 [shape = 'u8[200704]{0}', space=vmem, size = 0x31000, scoped, tag = 'input window, operand 1, single buffered']
    #allocation3 [shape = 's32[1]{0}', space=sflag, size = 0x4, scoped, tag = 'scoped memory for domain_classifier_forward.1']
    #allocation4 [shape = 's32[1]{0}', space=sflag, size = 0x4, scoped, tag = 'scoped memory for domain_classifier_forward.1']
    #allocation5 [shape = 'u8[4096]{0}', space=vmem, size = 0x1000, scoped, tag = 'output window, operand 0, single buffered']
    %12 = vsyncpa [#allocation3], 0
    %13 = vsyncpa [#allocation4], 0
    // Predicated region
    $region2: #{domain_classifier_forward.1} parent=1 // pred_check
      _
    $region3: #{domain_classifier_forward.1} parent=1 // pred_check_branch
      %15 = sbr.rel (0) target = $region5
    $region4: #{domain_classifier_forward.1} parent=1 // pred_region
      _
    $region5: #{domain_classifier_forward.1} parent=1 // pred_fallthru
      _
    // Predicated region
    $region6: #{domain_classifier_forward.1} parent=1 // pred_check
      _
    $region7: #{domain_classifier_forward.1} parent=1 // pred_check_branch
      %17 = sbr.rel (0) target = $region9
    $region8: #{domain_classifier_forward.1} parent=1 // pred_region
      %s19 = ssub.s32 6272, 6272
      %20 = vsyncadd [#allocation3], %s19
      %s21 = sshll.u32 [#allocation2], 4
      %s22 = int_to_ptr.vmem [resolvable:$true] %s21
      %27 = dma.hbm_to_vmem [thread:$0]  %s1, 6272, %s22, [#allocation3], 128, 128, 8
    $region9: #{domain_classifier_forward.1} parent=1 // pred_fallthru
      _
    // Predicated region
    $region10: #{domain_classifier_forward.1} parent=1 // pred_check
      _
    $region11: #{domain_classifier_forward.1} parent=1 // pred_check_branch
      %29 = sbr.rel (0) target = $region13
    $region12: #{domain_classifier_forward.1} parent=1 // pred_region
      _
    $region13: #{domain_classifier_forward.1} parent=1 // pred_fallthru
      _
    // Predicated region
    $region14: #{domain_classifier_forward.1} parent=1 // pred_check
      _
    $region15: #{domain_classifier_forward.1} parent=1 // pred_check_branch
      %31 = sbr.rel (0) target = $region17
    $region16: #{domain_classifier_forward.1} parent=1 // pred_region
      _
    $region17: #{domain_classifier_forward.1} parent=1 // pred_fallthru
      _
    // Predicated region
    $region18: #{domain_classifier_forward.1} parent=1 // pred_check
      _
    $region19: #{domain_classifier_forward.1} parent=1 // pred_check_branch
      %33 = sbr.rel (0) target = $region21
    $region20: #{domain_classifier_forward.1} parent=1 // pred_region
      _
    $region21: #{domain_classifier_forward.1} parent=1 // pred_fallthru
      _
    // Predicated region
    $region22: #{domain_classifier_forward.1} parent=1 // pred_check
      _
    $region23: #{domain_classifier_forward.1} parent=1 // pred_check_branch
      %35 = sbr.rel (0) target = $region25
    $region24: #{domain_classifier_forward.1} parent=1 // pred_region
      _
    $region25: #{domain_classifier_forward.1} parent=1 // pred_fallthru
      _
    // Predicated region
    $region26: #{domain_classifier_forward.1} parent=1 // pred_check
      _
    $region27: #{domain_classifier_forward.1} parent=1 // pred_check_branch
      %37 = sbr.rel (0) target = $region29
    $region28: #{domain_classifier_forward.1} parent=1 // pred_region
      _
    $region29: #{domain_classifier_forward.1} parent=1 // pred_fallthru
      _
    // Predicated region
    $region30: #{domain_classifier_forward.1} parent=1 // pred_check
      _
    $region31: #{domain_classifier_forward.1} parent=1 // pred_check_branch
      %39 = sbr.rel (0) target = $region33
    $region32: #{domain_classifier_forward.1} parent=1 // pred_region
      %40 = dma.done [#allocation3], 6272
    $region33: #{domain_classifier_forward.1} parent=1 // pred_fallthru
      _
    %v41 = vld [vmem:[%s0] sm:$0xff]
    %v42 = vld [vmem:[%s0 + $0x8] sm:$0xff]
    %v43 = vld [vmem:[%s0 + $0x10] sm:$0xff]
    %v44 = vld [vmem:[%s0 + $0x18] sm:$0xff]
    %v45 = vld [vmem:[#allocation2] sm:$0xff]
    %v46 = vld [vmem:[#allocation2 + $0x8] sm:$0xff]
    %v47 = vld [vmem:[#allocation2 + $0x10] sm:$0xff]
    %v48 = vld [vmem:[#allocation2 + $0x18] sm:$0xff]
    %v49 = vld [vmem:[#allocation2 + $0x20] sm:$0xff]
    %v50 = vld [vmem:[#allocation2 + $0x28] sm:$0xff]
    %v51 = vld [vmem:[#allocation2 + $0x30] sm:$0xff]
    %v52 = vld [vmem:[#allocation2 + $0x38] sm:$0xff]
    %v53 = vld [vmem:[#allocation2 + $0x40] sm:$0xff]
    %v54 = vld [vmem:[#allocation2 + $0x48] sm:$0xff]
    %v55 = vld [vmem:[#allocation2 + $0x50] sm:$0xff]
    %v56 = vld [vmem:[#allocation2 + $0x58] sm:$0xff]
    %v57 = vld [vmem:[#allocation2 + $0x60] sm:$0xff]
    %v58 = vld [vmem:[#allocation2 + $0x68] sm:$0xff]
    %v59 = vld [vmem:[#allocation2 + $0x70] sm:$0xff]
    %v60 = vld [vmem:[#allocation2 + $0x78] sm:$0xff]
    %v61 = vld [vmem:[#allocation2 + $0x80] sm:$0xff]
    %v62 = vld [vmem:[#allocation2 + $0x88] sm:$0xff]
    %v63 = vld [vmem:[#allocation2 + $0x90] sm:$0xff]
    %v64 = vld [vmem:[#allocation2 + $0x98] sm:$0xff]
    %v65 = vld [vmem:[#allocation2 + $0xa0] sm:$0xff]
    %v66 = vld [vmem:[#allocation2 + $0xa8] sm:$0xff]
    %v67 = vld [vmem:[#allocation2 + $0xb0] sm:$0xff]
    %v68 = vld [vmem:[#allocation2 + $0xb8] sm:$0xff]
    %v69 = vld [vmem:[#allocation2 + $0xc0] sm:$0xff]
    %v70 = vld [vmem:[#allocation2 + $0xc8] sm:$0xff]
    %v71 = vld [vmem:[#allocation2 + $0xd0] sm:$0xff]
    %v72 = vld [vmem:[#allocation2 + $0xd8] sm:$0xff]
    %v73 = vld [vmem:[#allocation2 + $0xe0] sm:$0xff]
    %v74 = vld [vmem:[#allocation2 + $0xe8] sm:$0xff]
    %v75 = vld [vmem:[#allocation2 + $0xf0] sm:$0xff]
    %v76 = vld [vmem:[#allocation2 + $0xf8] sm:$0xff]
    %v77 = vld [vmem:[#allocation2 + $0x100] sm:$0xff]
    %v78 = vld [vmem:[#allocation2 + $0x108] sm:$0xff]
    %v79 = vld [vmem:[#allocation2 + $0x110] sm:$0xff]
    %v80 = vld [vmem:[#allocation2 + $0x118] sm:$0xff]
    %v81 = vld [vmem:[#allocation2 + $0x120] sm:$0xff]
    %v82 = vld [vmem:[#allocation2 + $0x128] sm:$0xff]
    %v83 = vld [vmem:[#allocation2 + $0x130] sm:$0xff]
    %v84 = vld [vmem:[#allocation2 + $0x138] sm:$0xff]
    %v85 = vld [vmem:[#allocation2 + $0x140] sm:$0xff]
    %v86 = vld [vmem:[#allocation2 + $0x148] sm:$0xff]
    %v87 = vld [vmem:[#allocation2 + $0x150] sm:$0xff]
    %v88 = vld [vmem:[#allocation2 + $0x158] sm:$0xff]
    %v89 = vld [vmem:[#allocation2 + $0x160] sm:$0xff]
    %v90 = vld [vmem:[#allocation2 + $0x168] sm:$0xff]
    %v91 = vld [vmem:[#allocation2 + $0x170] sm:$0xff]
    %v92 = vld [vmem:[#allocation2 + $0x178] sm:$0xff]
    %v93 = vld [vmem:[#allocation2 + $0x180] sm:$0x7]
    %v94 = vld [vmem:[%s2] sm:$0x1]
    %v96 = vlaneseq
    %v97 = vshrl.u32 %v96, 7
    %v98 = vsub.s32 0, %v97
    %v99 = vrot.slane %v94, %v98
    %vm101 = vcmask 23552
    %v103 = vsel %vm101, %v44, 0
    %vm105 = vcmask 1042432
    %v107 = vsel %vm105, %v93, 0
    %109 = vmatprep.subr.mxu0 0.0
    %110 = vmatpush1.msra.mxu0 %v60
    %111 = vmatprep.subr.mxu0 0.0
    %112 = vmatpush1.msra.mxu0 %v59
    %113 = vmatprep.subr.mxu0 0.0
    %114 = vmatpush1.msra.mxu0 %v58
    %115 = vmatprep.subr.mxu0 0.0
    %116 = vmatpush1.msra.mxu0 %v57
    %117 = vmatprep.subr.mxu0 0.0
    %118 = vmatpush1.msra.mxu0 %v56
    %119 = vmatprep.subr.mxu0 0.0
    %120 = vmatpush1.msra.mxu0 %v55
    %121 = vmatprep.subr.mxu0 0.0
    %122 = vmatpush1.msra.mxu0 %v54
    %123 = vmatprep.subr.mxu0 0.0
    %124 = vmatpush1.msra.mxu0 %v53
    %125 = vmatprep.subr.mxu0 0.0
    %126 = vmatpush1.msra.mxu0 %v52
    %127 = vmatprep.subr.mxu0 0.0
    %128 = vmatpush1.msra.mxu0 %v51
    %129 = vmatprep.subr.mxu0 0.0
    %130 = vmatpush1.msra.mxu0 %v50
    %131 = vmatprep.subr.mxu0 0.0
    %132 = vmatpush1.msra.mxu0 %v49
    %133 = vmatprep.subr.mxu0 0.0
    %134 = vmatpush1.msra.mxu0 %v48
    %135 = vmatprep.subr.mxu0 0.0
    %136 = vmatpush1.msra.mxu0 %v47
    %137 = vmatprep.subr.mxu0 0.0
    %138 = vmatpush1.msra.mxu0 %v46
    %139 = vmatprep.subr.mxu0 0.0
    %140 = vmatpush1.msra.mxu0 %v45
    %141 = vmatprep.subr.mxu0 0.0
    %142 = vmatpush2.msra.mxu0 %v76
    %143 = vmatprep.subr.mxu0 0.0
    %144 = vmatpush2.msra.mxu0 %v75
    %145 = vmatprep.subr.mxu0 0.0
    %146 = vmatpush2.msra.mxu0 %v74
    %147 = vmatprep.subr.mxu0 0.0
    %148 = vmatpush2.msra.mxu0 %v73
    %149 = vmatprep.subr.mxu0 0.0
    %150 = vmatpush2.msra.mxu0 %v72
    %151 = vmatprep.subr.mxu0 0.0
    %152 = vmatpush2.msra.mxu0 %v71
    %153 = vmatprep.subr.mxu0 0.0
    %154 = vmatpush2.msra.mxu0 %v70
    %155 = vmatprep.subr.mxu0 0.0
    %156 = vmatpush2.msra.mxu0 %v69
    %157 = vmatprep.subr.mxu0 0.0
    %158 = vmatpush2.msra.mxu0 %v68
    %159 = vmatprep.subr.mxu0 0.0
    %160 = vmatpush2.msra.mxu0 %v67
    %161 = vmatprep.subr.mxu0 0.0
    %162 = vmatpush2.msra.mxu0 %v66
    %163 = vmatprep.subr.mxu0 0.0
    %164 = vmatpush2.msra.mxu0 %v65
    %165 = vmatprep.subr.mxu0 0.0
    %166 = vmatpush2.msra.mxu0 %v64
    %167 = vmatprep.subr.mxu0 0.0
    %168 = vmatpush2.msra.mxu0 %v63
    %169 = vmatprep.subr.mxu0 0.0
    %170 = vmatpush2.msra.mxu0 %v62
    %171 = vmatprep.subr.mxu0 0.0
    %172 = vmatpush2.msra.mxu0 %v61
    %173 = vmatprep.mubr.f32.mxu0 %v42
    %174 = vmatmul.mubr.f32.gmra.mxu0 %v41
    %v175 = vpop.f32.mrf.mxu0
    %v176 = vadd.f32 %v99, %v175
    %v177 = vpop.f32.mrf.mxu0
    %178 = vdwg.mxu0
    %179 = vmatprep.subr.mxu0 0.0
    %180 = vmatpush1.msra.mxu0 %v92
    %181 = vmatprep.subr.mxu0 0.0
    %182 = vmatpush1.msra.mxu0 %v91
    %183 = vmatprep.subr.mxu0 0.0
    %184 = vmatpush1.msra.mxu0 %v90
    %185 = vmatprep.subr.mxu0 0.0
    %186 = vmatpush1.msra.mxu0 %v89
    %187 = vmatprep.subr.mxu0 0.0
    %188 = vmatpush1.msra.mxu0 %v88
    %189 = vmatprep.subr.mxu0 0.0
    %190 = vmatpush1.msra.mxu0 %v87
    %191 = vmatprep.subr.mxu0 0.0
    %192 = vmatpush1.msra.mxu0 %v86
    %193 = vmatprep.subr.mxu0 0.0
    %194 = vmatpush1.msra.mxu0 %v85
    %195 = vmatprep.subr.mxu0 0.0
    %196 = vmatpush1.msra.mxu0 %v84
    %197 = vmatprep.subr.mxu0 0.0
    %198 = vmatpush1.msra.mxu0 %v83
    %199 = vmatprep.subr.mxu0 0.0
    %200 = vmatpush1.msra.mxu0 %v82
    %201 = vmatprep.subr.mxu0 0.0
    %202 = vmatpush1.msra.mxu0 %v81
    %203 = vmatprep.subr.mxu0 0.0
    %204 = vmatpush1.msra.mxu0 %v80
    %205 = vmatprep.subr.mxu0 0.0
    %206 = vmatpush1.msra.mxu0 %v79
    %207 = vmatprep.subr.mxu0 0.0
    %208 = vmatpush1.msra.mxu0 %v78
    %209 = vmatprep.subr.mxu0 0.0
    %210 = vmatpush1.msra.mxu0 %v77
    %211 = vmatprep.subr.mxu0 0.0
    %212 = vmatpush2.msra.mxu0 0.0
    %213 = vmatprep.subr.mxu0 0.0
    %214 = vmatpush2.msra.mxu0 0.0
    %215 = vmatprep.subr.mxu0 0.0
    %216 = vmatpush2.msra.mxu0 0.0
    %217 = vmatprep.subr.mxu0 0.0
    %218 = vmatpush2.msra.mxu0 0.0
    %219 = vmatprep.subr.mxu0 0.0
    %220 = vmatpush2.msra.mxu0 0.0
    %221 = vmatprep.subr.mxu0 0.0
    %222 = vmatpush2.msra.mxu0 0.0
    %223 = vmatprep.subr.mxu0 0.0
    %224 = vmatpush2.msra.mxu0 0.0
    %225 = vmatprep.subr.mxu0 0.0
    %226 = vmatpush2.msra.mxu0 0.0
    %227 = vmatprep.subr.mxu0 0.0
    %228 = vmatpush2.msra.mxu0 0.0
    %229 = vmatprep.subr.mxu0 0.0
    %230 = vmatpush2.msra.mxu0 0.0
    %231 = vmatprep.subr.mxu0 0.0
    %232 = vmatpush2.msra.mxu0 0.0
    %233 = vmatprep.subr.mxu0 0.0
    %234 = vmatpush2.msra.mxu0 0.0
    %235 = vmatprep.subr.mxu0 0.0
    %236 = vmatpush2.msra.mxu0 0.0
    %237 = vmatprep.subr.mxu0 0.0
    %238 = vmatpush2.msra.mxu0 0.0
    %239 = vmatprep.subr.mxu0 0.0
    %240 = vmatpush2.msra.mxu0 0.0
    %241 = vmatprep.subr.mxu0 0.0
    %242 = vmatpush2.msra.mxu0 %v107
    %243 = vmatprep.mubr.f32.mxu0 %v103
    %244 = vmatmul.mubr.f32.gmra.mxu0 %v43
    %v245 = vpop.f32.mrf.mxu0
    %v246 = vadd.f32 %v176, %v245
    %v247 = vpop.f32.mrf.mxu0
    %248 = vdwg.mxu0
    %v249 = vmax.f32 %v246, 0.0
    %v250 = vld [vmem:[%s3] sm:$0xff]
    %v251 = vld [vmem:[%s3 + $0x8] sm:$0xff]
    %v252 = vld [vmem:[%s3 + $0x10] sm:$0xff]
    %v253 = vld [vmem:[%s3 + $0x18] sm:$0xff]
    %v254 = vld [vmem:[%s3 + $0x20] sm:$0xff]
    %v255 = vld [vmem:[%s3 + $0x28] sm:$0xff]
    %v256 = vld [vmem:[%s3 + $0x30] sm:$0xff]
    %v257 = vld [vmem:[%s3 + $0x38] sm:$0xff]
    %v258 = vld [vmem:[%s3 + $0x40] sm:$0xff]
    %v259 = vld [vmem:[%s3 + $0x48] sm:$0xff]
    %v260 = vld [vmem:[%s3 + $0x50] sm:$0xff]
    %v261 = vld [vmem:[%s3 + $0x58] sm:$0xff]
    %v262 = vld [vmem:[%s3 + $0x60] sm:$0xff]
    %v263 = vld [vmem:[%s3 + $0x68] sm:$0xff]
    %v264 = vld [vmem:[%s3 + $0x70] sm:$0xff]
    %v265 = vld [vmem:[%s3 + $0x78] sm:$0xff]
    %v266 = vld [vmem:[%s4] sm:$0x1]
    %v268 = vlaneseq
    %v269 = vshrl.u32 %v268, 7
    %v270 = vsub.s32 0, %v269
    %v271 = vrot.slane %v266, %v270
    %273 = vmatprep.subr.mxu0 0.0
    %274 = vmatpush1.msra.mxu0 %v265
    %275 = vmatprep.subr.mxu0 0.0
    %276 = vmatpush1.msra.mxu0 %v264
    %277 = vmatprep.subr.mxu0 0.0
    %278 = vmatpush1.msra.mxu0 %v263
    %279 = vmatprep.subr.mxu0 0.0
    %280 = vmatpush1.msra.mxu0 %v262
    %281 = vmatprep.subr.mxu0 0.0
    %282 = vmatpush1.msra.mxu0 %v261
    %283 = vmatprep.subr.mxu0 0.0
    %284 = vmatpush1.msra.mxu0 %v260
    %285 = vmatprep.subr.mxu0 0.0
    %286 = vmatpush1.msra.mxu0 %v259
    %287 = vmatprep.subr.mxu0 0.0
    %288 = vmatpush1.msra.mxu0 %v258
    %289 = vmatprep.subr.mxu0 0.0
    %290 = vmatpush1.msra.mxu0 %v257
    %291 = vmatprep.subr.mxu0 0.0
    %292 = vmatpush1.msra.mxu0 %v256
    %293 = vmatprep.subr.mxu0 0.0
    %294 = vmatpush1.msra.mxu0 %v255
    %295 = vmatprep.subr.mxu0 0.0
    %296 = vmatpush1.msra.mxu0 %v254
    %297 = vmatprep.subr.mxu0 0.0
    %298 = vmatpush1.msra.mxu0 %v253
    %299 = vmatprep.subr.mxu0 0.0
    %300 = vmatpush1.msra.mxu0 %v252
    %301 = vmatprep.subr.mxu0 0.0
    %302 = vmatpush1.msra.mxu0 %v251
    %303 = vmatprep.subr.mxu0 0.0
    %304 = vmatpush1.msra.mxu0 %v250
    %305 = vmatprep.subr.mxu0 0.0
    %306 = vmatpush2.msra.mxu0 0.0
    %307 = vmatprep.subr.mxu0 0.0
    %308 = vmatpush2.msra.mxu0 0.0
    %309 = vmatprep.subr.mxu0 0.0
    %310 = vmatpush2.msra.mxu0 0.0
    %311 = vmatprep.subr.mxu0 0.0
    %312 = vmatpush2.msra.mxu0 0.0
    %313 = vmatprep.subr.mxu0 0.0
    %314 = vmatpush2.msra.mxu0 0.0
    %315 = vmatprep.subr.mxu0 0.0
    %316 = vmatpush2.msra.mxu0 0.0
    %317 = vmatprep.subr.mxu0 0.0
    %318 = vmatpush2.msra.mxu0 0.0
    %319 = vmatprep.subr.mxu0 0.0
    %320 = vmatpush2.msra.mxu0 0.0
    %321 = vmatprep.subr.mxu0 0.0
    %322 = vmatpush2.msra.mxu0 0.0
    %323 = vmatprep.subr.mxu0 0.0
    %324 = vmatpush2.msra.mxu0 0.0
    %325 = vmatprep.subr.mxu0 0.0
    %326 = vmatpush2.msra.mxu0 0.0
    %327 = vmatprep.subr.mxu0 0.0
    %328 = vmatpush2.msra.mxu0 0.0
    %329 = vmatprep.subr.mxu0 0.0
    %330 = vmatpush2.msra.mxu0 0.0
    %331 = vmatprep.subr.mxu0 0.0
    %332 = vmatpush2.msra.mxu0 0.0
    %333 = vmatprep.subr.mxu0 0.0
    %334 = vmatpush2.msra.mxu0 0.0
    %335 = vmatprep.subr.mxu0 0.0
    %336 = vmatpush2.msra.mxu0 0.0
    %337 = vmatprep.mubr.f32.mxu0 0.0
    %338 = vmatmul.mubr.f32.gmra.mxu0 %v249
    %v339 = vpop.f32.mrf.mxu0
    %v340 = vadd.f32 %v271, %v339
    %v341 = vpop.f32.mrf.mxu0
    %342 = vdwg.mxu0
    %v343 = vmax.f32 %v340, 0.0
    %v344 = vld [vmem:[%s5] sm:$0xff]
    %v345 = vld [vmem:[%s5 + $0x8] sm:$0xff]
    %v346 = vld [vmem:[%s5 + $0x10] sm:$0xff]
    %v347 = vld [vmem:[%s5 + $0x18] sm:$0xff]
    %v348 = vld [vmem:[%s5 + $0x20] sm:$0xff]
    %v349 = vld [vmem:[%s5 + $0x28] sm:$0xff]
    %v350 = vld [vmem:[%s5 + $0x30] sm:$0xff]
    %v351 = vld [vmem:[%s5 + $0x38] sm:$0xff]
    %v352 = vld [vmem:[%s6] sm:$0x1]
    %v354 = vlaneseq
    %v355 = vshrl.u32 %v354, 7
    %v356 = vsub.s32 0, %v355
    %v357 = vrot.slane %v352, %v356
    %vm359 = vcmask 523264
    %v361 = vsel %vm359, %v343, 0
    %363 = vmatprep.subr.mxu0 0.0
    %364 = vmatpush1.msra.mxu0 0.0
    %365 = vmatprep.subr.mxu0 0.0
    %366 = vmatpush1.msra.mxu0 0.0
    %367 = vmatprep.subr.mxu0 0.0
    %368 = vmatpush1.msra.mxu0 0.0
    %369 = vmatprep.subr.mxu0 0.0
    %370 = vmatpush1.msra.mxu0 0.0
    %371 = vmatprep.subr.mxu0 0.0
    %372 = vmatpush1.msra.mxu0 0.0
    %373 = vmatprep.subr.mxu0 0.0
    %374 = vmatpush1.msra.mxu0 0.0
    %375 = vmatprep.subr.mxu0 0.0
    %376 = vmatpush1.msra.mxu0 0.0
    %377 = vmatprep.subr.mxu0 0.0
    %378 = vmatpush1.msra.mxu0 0.0
    %379 = vmatprep.subr.mxu0 0.0
    %380 = vmatpush1.msra.mxu0 %v351
    %381 = vmatprep.subr.mxu0 0.0
    %382 = vmatpush1.msra.mxu0 %v350
    %383 = vmatprep.subr.mxu0 0.0
    %384 = vmatpush1.msra.mxu0 %v349
    %385 = vmatprep.subr.mxu0 0.0
    %386 = vmatpush1.msra.mxu0 %v348
    %387 = vmatprep.subr.mxu0 0.0
    %388 = vmatpush1.msra.mxu0 %v347
    %389 = vmatprep.subr.mxu0 0.0
    %390 = vmatpush1.msra.mxu0 %v346
    %391 = vmatprep.subr.mxu0 0.0
    %392 = vmatpush1.msra.mxu0 %v345
    %393 = vmatprep.subr.mxu0 0.0
    %394 = vmatpush1.msra.mxu0 %v344
    %395 = vmatprep.subr.mxu0 0.0
    %396 = vmatpush2.msra.mxu0 0.0
    %397 = vmatprep.subr.mxu0 0.0
    %398 = vmatpush2.msra.mxu0 0.0
    %399 = vmatprep.subr.mxu0 0.0
    %400 = vmatpush2.msra.mxu0 0.0
    %401 = vmatprep.subr.mxu0 0.0
    %402 = vmatpush2.msra.mxu0 0.0
    %403 = vmatprep.subr.mxu0 0.0
    %404 = vmatpush2.msra.mxu0 0.0
    %405 = vmatprep.subr.mxu0 0.0
    %406 = vmatpush2.msra.mxu0 0.0
    %407 = vmatprep.subr.mxu0 0.0
    %408 = vmatpush2.msra.mxu0 0.0
    %409 = vmatprep.subr.mxu0 0.0
    %410 = vmatpush2.msra.mxu0 0.0
    %411 = vmatprep.subr.mxu0 0.0
    %412 = vmatpush2.msra.mxu0 0.0
    %413 = vmatprep.subr.mxu0 0.0
    %414 = vmatpush2.msra.mxu0 0.0
    %415 = vmatprep.subr.mxu0 0.0
    %416 = vmatpush2.msra.mxu0 0.0
    %417 = vmatprep.subr.mxu0 0.0
    %418 = vmatpush2.msra.mxu0 0.0
    %419 = vmatprep.subr.mxu0 0.0
    %420 = vmatpush2.msra.mxu0 0.0
    %421 = vmatprep.subr.mxu0 0.0
    %422 = vmatpush2.msra.mxu0 0.0
    %423 = vmatprep.subr.mxu0 0.0
    %424 = vmatpush2.msra.mxu0 0.0
    %425 = vmatprep.subr.mxu0 0.0
    %426 = vmatpush2.msra.mxu0 0.0
    %427 = vmatprep.mubr.f32.mxu0 0.0
    %428 = vmatmul.mubr.f32.gmra.mxu0 %v361
    %v429 = vpop.f32.mrf.mxu0
    %v430 = vadd.f32 %v357, %v429
    %v431 = vpop.f32.mrf.mxu0
    %432 = vdwg.mxu0
    %vm433 = vcmask 39936
    %434 = vst.msk [vmem:[#allocation5] sm:$0xff] %vm433, %v430
    // Predicated region
    $region34: #{domain_classifier_forward.1} parent=1 // pred_check
      _
    $region35: #{domain_classifier_forward.1} parent=1 // pred_check_branch
      %436 = sbr.rel (0) target = $region37
    $region36: #{domain_classifier_forward.1} parent=1 // pred_region
      %s438 = ssub.s32 128, 128
      %439 = vsyncadd [#allocation4], %s438
      %s441 = sshll.u32 [#allocation5], 4
      %s442 = int_to_ptr.vmem [resolvable:$true] %s441
      %444 = dma.vmem_to_hbm [thread:$0]  %s442, 128, %s7, [#allocation4]
    $region37: #{domain_classifier_forward.1} parent=1 // pred_fallthru
      _
    // Predicated region
    $region38: #{domain_classifier_forward.1} parent=1 // pred_check
      _
    $region39: #{domain_classifier_forward.1} parent=1 // pred_check_branch
      %446 = sbr.rel (0) target = $region41
    $region40: #{domain_classifier_forward.1} parent=1 // pred_region
      %447 = dma.done [#allocation4], 128
    $region41: #{domain_classifier_forward.1} parent=1 // pred_fallthru
      _
    %448 = vsyncpa [#allocation3], 1
    %449 = vsyncpa [#allocation4], 1

</llo_original>
